<compile_context>
chip_gen: v7x
topology: tpu7x:2x2x1
jax: 0.10.0
libtpu: 0.0.40
codegen_flags: <defaults>
</compile_context>

<pallas_src>
import jax
import jax.numpy as jnp
from jax.experimental import pallas as pl
from jax.experimental.pallas import tpu as pltpu


def _round_up(x, m):
    return (x + m - 1) // m * m


def _cdiv(a, b):
    return -(-a // b)


# ----------------------------------------------------------------------------
# Hardware-aware tiling helpers
# ----------------------------------------------------------------------------
def _tpu_vmem_capacity():
    try:
        return int(pltpu.get_tpu_info().vmem_capacity_bytes)
    except Exception:
        return 64 * 1024 * 1024  # conservative fallback (v7x-sized)


def _device_profile():
    """(target matmul M rows per grid step, has >1 TensorCore per chip)."""
    kind = ""
    try:
        kind = jax.devices()[0].device_kind.lower()
    except Exception:
        pass
    if "v5 lite" in kind or "v5e" in kind:
        return 256, False          # 4x128^2 MXU saturates at small M
    if "v6" in kind:
        return 512, False          # amortize ~0.35us/step, plenty of VMEM
    if "7" in kind:
        return 384, True           # v7x: 2 TCs, only 64 MiB VMEM per TC
    if "v4" in kind or "v5p" in kind:
        return 512, True           # megacore chips
    return 256, False


def _vmem_bytes_per_step(bt, L, S, dec, attn, dec_p, attn_p,
                         act_bytes, w_bytes):
    """Conservative estimate of VMEM held for one grid step."""
    rows = bt * L
    big_n = attn_p + dec_p
    # double-buffered input / output pipeline blocks
    blocks = 2 * act_bytes * (bt * L * dec + bt * S * attn      # inputs
                              + rows * dec_p + rows * S)        # outputs
    # constant weight blocks (index_map never changes, but the default
    # pipeliner still keeps two copies resident)
    weights = 2 * (w_bytes * (dec * big_n + attn * dec_p) + 4 * big_n)
    # float32 intermediates
    temps = 4 * (rows * big_n          # fused GEMM result
                 + 3 * rows * S        # scores / exp / probs
                 + rows * attn         # mix
                 + 2 * rows * dec_p)   # dec_part + pre-activation
    if w_bytes != act_bytes:
        temps += w_bytes * (rows * dec + bt * S * attn)  # bf16 cast copies
    return blocks + weights + temps


def _choose_batch_tile(B, L, S, dec, attn, dec_p, attn_p,
                       act_bytes, w_bytes, target_rows, budget, multi_core):
    bt = max(1, min(B, _cdiv(target_rows, max(L, 1))))
    while bt > 1 and _vmem_bytes_per_step(
            bt, L, S, dec, attn, dec_p, attn_p, act_bytes, w_bytes) > budget:
        bt -= 1
    if multi_core and B >= 2:
        # >=2 grid steps so dimension_semantics=('parallel',) can shard the
        # batch axis across the two TensorCores; prefer an even step count.
        bt = min(bt, _cdiv(B, 2))
        steps = _cdiv(B, bt)
        if steps > 1 and steps % 2 == 1:
            bt = max(1, _cdiv(B, steps + 1))
    return bt


# ----------------------------------------------------------------------------
# One-time weight preparation (hoisted out of the per-call path)
# ----------------------------------------------------------------------------
def make_attention_params(attn_w, attn_b, out_w, out_b, compute_dtype=jnp.float32):
    """Pre-transpose / pad / fuse the weights of Attention('general', project=True).

    attn_w : (attn, dec)   attn_b : (attn,)    -- nn.Linear(dec, attn)
    out_w  : (dec, attn+dec) out_b : (dec,)    -- nn.Linear(dec+attn, dec),
                                                  input ordered [mix | output]
    Returns (w_big, b_big, w_mix):
      w_big : (dec, attn_p + dec_p)  = [attn_w^T (pad) | out_w_dec^T (pad)]
      b_big : (1,   attn_p + dec_p)  = [attn_b (pad)   | out_b (pad)]  (f32)
      w_mix : (attn, dec_p)          = out_w_mix^T (pad cols)
    Prepare in bfloat16 (and pass bf16 activations) to run the MXU in bf16.
    """
    attn_size, dec = attn_w.shape
    dec_p = _round_up(dec, 128)
    attn_p = _round_up(attn_size, 128)

    w_attn = jnp.zeros((dec, attn_p), compute_dtype)
    w_attn = w_attn.at[:, :attn_size].set(attn_w.T.astype(compute_dtype))
    w_dec = jnp.zeros((dec, dec_p), compute_dtype)
    w_dec = w_dec.at[:, :dec].set(out_w[:, attn_size:].T.astype(compute_dtype))
    w_big = jnp.concatenate([w_attn, w_dec], axis=1)          # (dec, attn_p+dec_p)

    b_big = jnp.zeros((1, attn_p + dec_p), jnp.float32)
    b_big = b_big.at[0, :attn_size].set(attn_b.astype(jnp.float32))
    b_big = b_big.at[0, attn_p:attn_p + dec].set(out_b.astype(jnp.float32))

    w_mix = jnp.zeros((attn_size, dec_p), compute_dtype)
    w_mix = w_mix.at[:, :dec].set(out_w[:, :attn_size].T.astype(compute_dtype))
    return w_big, b_big, w_mix


# ----------------------------------------------------------------------------
# Kernel
# ----------------------------------------------------------------------------
def _attention_kernel(out_ref, ctx_ref, w_big_ref, b_big_ref, w_mix_ref,
                      o_ref, attn_ref):
    # out_ref : (bt, L, dec)        ctx_ref : (bt, S, attn)    (unpadded)
    # w_big   : (dec, attn_p+dec_p) b_big   : (1, attn_p+dec_p) f32
    # w_mix   : (attn, dec_p)
    # o_ref   : (bt, L, dec_p)      attn_ref: (bt, L, S)
    bt, L, dec = out_ref.shape
    _, S, attn = ctx_ref.shape
    dec_p = o_ref.shape[-1]
    attn_p = w_big_ref.shape[1] - dec_p
    rows = bt * L
    cdt = w_big_ref.dtype                       # MXU operand dtype
    use_approx = jnp.dtype(cdt) == jnp.dtype(jnp.bfloat16)

    out2d = out_ref[...].reshape(rows, dec).astype(cdt)
    ctx3 = ctx_ref[...].astype(cdt)

    # Fused wide GEMM: attn_w(output) and output @ W_dec in one MXU pass;
    # both biases are pre-folded into b_big.
    big = jnp.dot(out2d, w_big_ref[...],
                  preferred_element_type=jnp.float32) + b_big_ref[...]
    mapped = big[:, :attn].reshape(bt, L, attn)          # (bt, L, attn)
    dec_part = big[:, attn_p:]                           # (rows, dec_p), f32

    # scores = mapped @ context^T — contract the feature axis directly
    # (no explicit transpose / XLU pass).
    scores = jax.lax.dot_general(
        mapped.astype(cdt), ctx3,
        dimension_numbers=(((2,), (2,)), ((0,), (0,))),
        preferred_element_type=jnp.float32)              # (bt, L, S)

    # numerically-stable softmax over the (unpadded) context length
    m = jnp.max(scores, axis=-1, keepdims=True)
    e = jnp.exp(scores - m)
    denom = jnp.sum(e, axis=-1, keepdims=True)
    probs = e * pl.reciprocal(denom, approx=bool(use_approx))
    attn_ref[...] = probs.astype(attn_ref.dtype)

    # mix = attn @ context
    mix = jax.lax.dot_general(
        probs.astype(cdt), ctx3,
        dimension_numbers=(((2,), (1,)), ((0,), (0,))),
        preferred_element_type=jnp.float32)              # (bt, L, attn)

    # linear_out(cat([mix, output])): mix-half matmul + precomputed dec_part.
    # The zero weight/bias columns make the padded output lanes exactly 0.
    pre = jnp.dot(mix.reshape(rows, attn).astype(cdt), w_mix_ref[...],
                  preferred_element_type=jnp.float32) + dec_part
    o_ref[...] = jnp.tanh(pre).reshape(bt, L, dec_p).astype(o_ref.dtype)


# ----------------------------------------------------------------------------
# Wrapper
# ----------------------------------------------------------------------------
def attention_general(output, context, params):
    """Forward pass of Attention(mode='general', project=True).

    output  : (B, out_len, dec)      context : (B, in_len, attn)
    params  : result of make_attention_params(...)
    returns : (out (B, out_len, dec), attn (B, out_len, in_len))
    """
    w_big, b_big, w_mix = params
    B, out_len, dec = output.shape
    _, in_len, attn_size = context.shape
    dtype = output.dtype

    dec_p = w_mix.shape[1]
    attn_p = w_big.shape[1] - dec_p
    act_bytes = jnp.dtype(dtype).itemsize
    w_bytes = jnp.dtype(w_big.dtype).itemsize

    # generation-aware tiling / VMEM budget
    target_rows, multi_core = _device_profile()
    vmem_limit = int(min(_tpu_vmem_capacity() * 3 // 4, 96 * 1024 * 1024))
    bt = _choose_batch_tile(B, out_len, in_len, dec, attn_size, dec_p, attn_p,
                            act_bytes, w_bytes, target_rows,
                            budget=int(vmem_limit * 0.9),
                            multi_core=multi_core)
    grid = (_cdiv(B, bt),)

    const = lambda shape: pl.BlockSpec(shape, lambda b: (0,) * len(shape))
    grid_spec = pltpu.PrefetchScalarGridSpec(
        num_scalar_prefetch=0,
        grid=grid,
        in_specs=[
            # unpadded activations: trailing block dims == full array dims
            pl.BlockSpec((bt, out_len, dec), lambda b: (b, 0, 0)),
            pl.BlockSpec((bt, in_len, attn_size), lambda b: (b, 0, 0)),
            # constant (grid-invariant) weight blocks, resident in VMEM
            const(w_big.shape),
            const(b_big.shape),
            const(w_mix.shape),
        ],
        out_specs=[
            pl.BlockSpec((bt, out_len, dec_p), lambda b: (b, 0, 0)),
            pl.BlockSpec((bt, out_len, in_len), lambda b: (b, 0, 0)),
        ],
    )

    out_pad, attn_map = pl.pallas_call(
        _attention_kernel,
        out_shape=(
            jax.ShapeDtypeStruct((B, out_len, dec_p), dtype),
            jax.ShapeDtypeStruct((B, out_len, in_len), dtype),
        ),
        grid_spec=grid_spec,
        compiler_params=pltpu.CompilerParams(
            dimension_semantics=("parallel",),
            vmem_limit_bytes=vmem_limit),
    )(output, context, w_big, b_big, w_mix)

    out = out_pad[..., :dec] if dec_p != dec else out_pad
    return out, attn_map


# ----------------------------------------------------------------------------
# Reference + test
# ----------------------------------------------------------------------------
def _reference(output, context, attn_w, attn_b, out_w, out_b):
    """Pure-JAX replica of the PyTorch forward (mode='general', project=True)."""
    mapped = jnp.einsum('bod,ad->boa', output, attn_w) + attn_b
    scores = jnp.einsum('boa,bia->boi', mapped, context)
    attn = jax.nn.softmax(scores, axis=-1)
    mix = jnp.einsum('boi,bia->boa', attn, context)
    combined = jnp.concatenate([mix, output], axis=-1)
    out = jnp.tanh(jnp.einsum('boc,dc->bod', combined, out_w) + out_b)
    return out, attn


if __name__ == "__main__":
    key = jax.random.PRNGKey(0)
    B, out_len, in_len = 2, 8, 16
    dec_size, attn_size = 32, 48

    k1, k2, k3, k4, k5, k6 = jax.random.split(key, 6)
    output = jax.random.normal(k1, (B, out_len, dec_size), jnp.float32)
    context = jax.random.normal(k2, (B, in_len, attn_size), jnp.float32)

    # Deterministic parameter init (uniform, roughly matching nn.Linear scale)
    attn_w = jax.random.uniform(k3, (attn_size, dec_size), jnp.float32,
                                -1.0 / dec_size ** 0.5, 1.0 / dec_size ** 0.5)
    attn_b = jax.random.uniform(k4, (attn_size,), jnp.float32,
                                -1.0 / dec_size ** 0.5, 1.0 / dec_size ** 0.5)
    fan_in = dec_size + attn_size
    out_w = jax.random.uniform(k5, (dec_size, fan_in), jnp.float32,
                               -1.0 / fan_in ** 0.5, 1.0 / fan_in ** 0.5)
    out_b = jax.random.uniform(k6, (dec_size,), jnp.float32,
                               -1.0 / fan_in ** 0.5, 1.0 / fan_in ** 0.5)

    # One-time weight preparation (hoisted out of the per-call path).
    params = make_attention_params(attn_w, attn_b, out_w, out_b,
                                   compute_dtype=jnp.float32)

    out, attn = attention_general(output, context, params)
    out = jax.block_until_ready(out)
    attn = jax.block_until_ready(attn)

    ref_out, ref_attn = _reference(output, context, attn_w, attn_b, out_w, out_b)
    assert jnp.allclose(out, ref_out, atol=1e-5, rtol=1e-5)
    assert jnp.allclose(attn, ref_attn, atol=1e-5, rtol=1e-5)

    print("KERNEL_OK")
</pallas_src>

<mosaic_0001>
module attributes {stable_mosaic.version = 11 : i64} {
  func.func @_attention_kernel(%arg0: i32, %arg1: memref<2x8x32xf32, #tpu.memory_space<vmem>>, %arg2: memref<2x16x48xf32, #tpu.memory_space<vmem>>, %arg3: memref<32x256xf32, #tpu.memory_space<vmem>>, %arg4: memref<1x256xf32, #tpu.memory_space<vmem>>, %arg5: memref<48x128xf32, #tpu.memory_space<vmem>>, %arg6: memref<2x8x128xf32, #tpu.memory_space<vmem>>, %arg7: memref<2x8x16xf32, #tpu.memory_space<vmem>>) attributes {dimension_semantics = [#tpu.dimension_semantics<parallel>], iteration_bounds = array<i64: 1>, scalar_prefetch = 0 : i64, scratch_operands = 0 : i64, tpu.core_type = #tpu.core_type<tc>, window_params = [{transform_indices = @transform_0, window_bounds = array<i64: 2, 8, 32>}, {transform_indices = @transform_1, window_bounds = array<i64: 2, 16, 48>}, {pipeline_mode = #tpu.pipeline_mode<synchronous>, transform_indices = @transform_2, window_bounds = array<i64: 32, 256>}, {pipeline_mode = #tpu.pipeline_mode<synchronous>, transform_indices = @transform_3, window_bounds = array<i64: 1, 256>}, {pipeline_mode = #tpu.pipeline_mode<synchronous>, transform_indices = @transform_4, window_bounds = array<i64: 48, 128>}, {transform_indices = @transform_5, window_bounds = array<i64: 2, 8, 128>}, {transform_indices = @transform_6, window_bounds = array<i64: 2, 8, 16>}]} {
    %c0 = arith.constant 0 : index
    %c0_0 = arith.constant 0 : index
    %c0_1 = arith.constant 0 : index
    %0 = vector.load %arg1[%c0, %c0_0, %c0_1] : memref<2x8x32xf32, #tpu.memory_space<vmem>>, vector<2x8x32xf32>
    %1 = vector.shape_cast %0 : vector<2x8x32xf32> to vector<16x32xf32>
    %c0_2 = arith.constant 0 : index
    %c0_3 = arith.constant 0 : index
    %c0_4 = arith.constant 0 : index
    %2 = vector.load %arg2[%c0_2, %c0_3, %c0_4] : memref<2x16x48xf32, #tpu.memory_space<vmem>>, vector<2x16x48xf32>
    %c0_5 = arith.constant 0 : index
    %c0_6 = arith.constant 0 : index
    %3 = vector.load %arg3[%c0_5, %c0_6] : memref<32x256xf32, #tpu.memory_space<vmem>>, vector<32x256xf32>
    %cst = arith.constant dense<0.000000e+00> : vector<16x256xf32>
    %4 = tpu.matmul %1, %3, %cst {dimension_numbers = #tpu.dot_dimension_numbers<[1], [0], [0], [1], [0, 0, 1, 1], [], []>} : vector<16x32xf32>, vector<32x256xf32>, vector<16x256xf32> -> vector<16x256xf32>
    %c0_7 = arith.constant 0 : index
    %c0_8 = arith.constant 0 : index
    %5 = vector.load %arg4[%c0_7, %c0_8] : memref<1x256xf32, #tpu.memory_space<vmem>>, vector<1x256xf32>
    %6 = vector.broadcast %5 : vector<1x256xf32> to vector<16x256xf32>
    %7 = arith.addf %4, %6 : vector<16x256xf32>
    %8 = vector.extract_strided_slice %7 {offsets = [0, 0], sizes = [16, 48], strides = [1, 1]} : vector<16x256xf32> to vector<16x48xf32>
    %9 = vector.shape_cast %8 : vector<16x48xf32> to vector<2x8x48xf32>
    %10 = vector.extract_strided_slice %7 {offsets = [0, 128], sizes = [16, 128], strides = [1, 1]} : vector<16x256xf32> to vector<16x128xf32>
    %cst_9 = arith.constant dense<0.000000e+00> : vector<2x8x16xf32>
    %11 = tpu.matmul %9, %2, %cst_9 {dimension_numbers = #tpu.dot_dimension_numbers<[2], [2], [1], [1], [0, 0, 0, 1, 1, 1], [0], [0]>} : vector<2x8x48xf32>, vector<2x16x48xf32>, vector<2x8x16xf32> -> vector<2x8x16xf32>
    %cst_10 = arith.constant dense<0xFF800000> : vector<2x8xf32>
    %12 = vector.multi_reduction <maximumf>, %11, %cst_10 [2] : vector<2x8x16xf32> to vector<2x8xf32>
    %13 = vector.shape_cast %12 : vector<2x8xf32> to vector<2x8x1xf32>
    %14 = vector.broadcast %13 : vector<2x8x1xf32> to vector<2x8x16xf32>
    %15 = arith.subf %11, %14 : vector<2x8x16xf32>
    %16 = math.exp %15 : vector<2x8x16xf32>
    %cst_11 = arith.constant dense<0.000000e+00> : vector<2x8xf32>
    %17 = vector.multi_reduction <add>, %16, %cst_11 [2] : vector<2x8x16xf32> to vector<2x8xf32>
    %18 = vector.shape_cast %17 : vector<2x8xf32> to vector<2x8x1xf32>
    %19 = tpu.reciprocal %18 : vector<2x8x1xf32> -> vector<2x8x1xf32>
    %20 = vector.broadcast %19 : vector<2x8x1xf32> to vector<2x8x16xf32>
    %21 = arith.mulf %16, %20 : vector<2x8x16xf32>
    %c0_12 = arith.constant 0 : index
    %c0_13 = arith.constant 0 : index
    %c0_14 = arith.constant 0 : index
    %22 = vector.load %arg7[%c0_12, %c0_13, %c0_14] : memref<2x8x16xf32, #tpu.memory_space<vmem>>, vector<2x8x16xf32>
    tpu.vector_store %arg7[%c0_12, %c0_13, %c0_14], %21 {strides = array<i32>} : memref<2x8x16xf32, #tpu.memory_space<vmem>>, vector<2x8x16xf32>,
    %cst_15 = arith.constant dense<0.000000e+00> : vector<2x8x48xf32>
    %23 = tpu.matmul %21, %2, %cst_15 {dimension_numbers = #tpu.dot_dimension_numbers<[2], [1], [1], [2], [0, 0, 0, 1, 1, 2], [0], [0]>} : vector<2x8x16xf32>, vector<2x16x48xf32>, vector<2x8x48xf32> -> vector<2x8x48xf32>
    %24 = vector.shape_cast %23 : vector<2x8x48xf32> to vector<16x48xf32>
    %c0_16 = arith.constant 0 : index
    %c0_17 = arith.constant 0 : index
    %25 = vector.load %arg5[%c0_16, %c0_17] : memref<48x128xf32, #tpu.memory_space<vmem>>, vector<48x128xf32>
    %cst_18 = arith.constant dense<0.000000e+00> : vector<16x128xf32>
    %26 = tpu.matmul %24, %25, %cst_18 {dimension_numbers = #tpu.dot_dimension_numbers<[1], [0], [0], [1], [0, 0, 1, 1], [], []>} : vector<16x48xf32>, vector<48x128xf32>, vector<16x128xf32> -> vector<16x128xf32>
    %27 = arith.addf %26, %10 : vector<16x128xf32>
    %28 = math.tanh %27 : vector<16x128xf32>
    %29 = vector.shape_cast %28 : vector<16x128xf32> to vector<2x8x128xf32>
    %c0_19 = arith.constant 0 : index
    %c0_20 = arith.constant 0 : index
    %c0_21 = arith.constant 0 : index
    %30 = vector.load %arg6[%c0_19, %c0_20, %c0_21] : memref<2x8x128xf32, #tpu.memory_space<vmem>>, vector<2x8x128xf32>
    tpu.vector_store %arg6[%c0_19, %c0_20, %c0_21], %29 {strides = array<i32>} : memref<2x8x128xf32, #tpu.memory_space<vmem>>, vector<2x8x128xf32>,
    return
  }
  func.func @transform_0(%arg0: i32) -> (i32, i32, i32) {
    %c0_i32 = arith.constant 0 : i32
    %c0_i32_0 = arith.constant 0 : i32
    %c0_i32_1 = arith.constant 0 : i32
    return %arg0, %c0_i32, %c0_i32_0 : i32, i32, i32
  }
  func.func @transform_1(%arg0: i32) -> (i32, i32, i32) {
    %c0_i32 = arith.constant 0 : i32
    %c0_i32_0 = arith.constant 0 : i32
    %c0_i32_1 = arith.constant 0 : i32
    return %arg0, %c0_i32, %c0_i32_0 : i32, i32, i32
  }
  func.func @transform_2(%arg0: i32) -> (i32, i32) {
    %c0_i32 = arith.constant 0 : i32
    %c0_i32_0 = arith.constant 0 : i32
    %c0_i32_1 = arith.constant 0 : i32
    return %c0_i32, %c0_i32_0 : i32, i32
  }
  func.func @transform_3(%arg0: i32) -> (i32, i32) {
    %c0_i32 = arith.constant 0 : i32
    %c0_i32_0 = arith.constant 0 : i32
    %c0_i32_1 = arith.constant 0 : i32
    return %c0_i32, %c0_i32_0 : i32, i32
  }
  func.func @transform_4(%arg0: i32) -> (i32, i32) {
    %c0_i32 = arith.constant 0 : i32
    %c0_i32_0 = arith.constant 0 : i32
    %c0_i32_1 = arith.constant 0 : i32
    return %c0_i32, %c0_i32_0 : i32, i32
  }
  func.func @transform_5(%arg0: i32) -> (i32, i32, i32) {
    %c0_i32 = arith.constant 0 : i32
    %c0_i32_0 = arith.constant 0 : i32
    %c0_i32_1 = arith.constant 0 : i32
    return %arg0, %c0_i32, %c0_i32_0 : i32, i32, i32
  }
  func.func @transform_6(%arg0: i32) -> (i32, i32, i32) {
    %c0_i32 = arith.constant 0 : i32
    %c0_i32_0 = arith.constant 0 : i32
    %c0_i32_1 = arith.constant 0 : i32
    return %arg0, %c0_i32, %c0_i32_0 : i32, i32, i32
  }
}

</mosaic_0001>

<llo_original>
// kernel: tpu_custom_call.1
$region0: #{tpu_custom_call.1}
  #allocation0 [shape = 'u32[]', space=smem, size = 0x4, offset = 0x4, fixed_abs, tag = 'smem constant byte address 0x4 - core index']
  #allocation1 [shape = 'u32[144,128]{1,0:T(1,128)}', space=vmem, size = 0x12000, scoped, tag = 'internal scratch']
  %s0 = inlined_call_operand.hbm [shape: f32[2,8,32], index: 0, kind: input, shape index: {}]
  %s1 = inlined_call_operand.hbm [shape: f32[2,16,48], index: 1, kind: input, shape index: {}]
  %s2 = inlined_call_operand.hbm [shape: f32[32,256], index: 2, kind: input, shape index: {}]
  %s3 = inlined_call_operand.vmem [shape: f32[1,256], index: 3, kind: input, shape index: {}]
  %s4 = inlined_call_operand.hbm [shape: f32[48,128], index: 4, kind: input, shape index: {}]
  %s5 = inlined_call_operand.hbm [shape: f32[2,8,128], index: 5, kind: output, shape index: {0}]
  %s6 = inlined_call_operand.hbm [shape: f32[2,8,16], index: 6, kind: output, shape index: {1}]
  %7 = xla_tuple %s5, %s6
  %s8 = sld [smem:[#allocation0]]
  $region54: #{tpu_custom_call.1} parent=0
    _
  %s10 = ssub.s32 1, %s8
  %s11 = scalar_select 0, %s10, %s8
  $region1: #{tpu_custom_call.1} parent=0
    #allocation2 [shape = 'u8[8192]{0}', space=vmem, size = 0x2000, scoped, tag = 'input window, operand 0, single buffered']
    #allocation3 [shape = 's32[1]{0}', space=sflag, size = 0x4, scoped, tag = 'scoped memory for tpu_custom_call.1']
    #allocation4 [shape = 's32[1]{0}', space=sflag, size = 0x4, scoped, tag = 'scoped memory for tpu_custom_call.1']
    #allocation5 [shape = 'u8[16384]{0}', space=vmem, size = 0x4000, scoped, tag = 'input window, operand 1, single buffered']
    #allocation6 [shape = 's32[1]{0}', space=sflag, size = 0x4, scoped, tag = 'scoped memory for tpu_custom_call.1']
    #allocation7 [shape = 'u8[32768]{0}', space=vmem, size = 0x8000, scoped, tag = 'input window, operand 2, single buffered']
    #allocation8 [shape = 'u8[24576]{0}', space=vmem, size = 0x6000, scoped, tag = 'input window, operand 4, single buffered']
    #allocation9 [shape = 's32[1]{0}', space=sflag, size = 0x4, scoped, tag = 'scoped memory for tpu_custom_call.1']
    #allocation10 [shape = 'u8[8192]{0}', space=vmem, size = 0x2000, scoped, tag = 'output window, operand 0, single buffered']
    #allocation11 [shape = 'u8[8192]{0}', space=vmem, size = 0x2000, scoped, tag = 'output window, operand 1, single buffered']
    #allocation12 [shape = 's32[1]{0}', space=sflag, size = 0x4, scoped, tag = 'scoped memory for tpu_custom_call.1']
    %12 = vsyncpa [#allocation3], 0
    %13 = vsyncpa [#allocation6], 0
    %14 = vsyncpa [#allocation9], 0
    %15 = vsyncpa [#allocation4], 0
    %16 = vsyncpa [#allocation12], 0
    // Predicated region
    $region2: #{tpu_custom_call.1} parent=1 // pred_check
      _
    $region3: #{tpu_custom_call.1} parent=1 // pred_check_branch
      %18 = sbr.rel (0) target = $region5
    $region4: #{tpu_custom_call.1} parent=1 // pred_region
      %s20 = ssub.s32 256, 256
      %21 = vsyncadd [#allocation3], %s20
      %s22 = sshll.u32 [#allocation2], 4
      %s23 = int_to_ptr.vmem [resolvable:$true] %s22
      %28 = dma.hbm_to_vmem [thread:$0]  %s0, 256, %s23, [#allocation3], 128, 128, 8
    $region5: #{tpu_custom_call.1} parent=1 // pred_fallthru
      _
    // Predicated region
    $region6: #{tpu_custom_call.1} parent=1 // pred_check
      _
    $region7: #{tpu_custom_call.1} parent=1 // pred_check_branch
      %30 = sbr.rel (0) target = $region9
    $region8: #{tpu_custom_call.1} parent=1 // pred_region
      %s32 = ssub.s32 512, 512
      %33 = vsyncadd [#allocation6], %s32
      %s34 = sshll.u32 [#allocation5], 4
      %s35 = int_to_ptr.vmem [resolvable:$true] %s34
      %40 = dma.hbm_to_vmem [thread:$0]  %s1, 512, %s35, [#allocation6], 128, 128, 8
    $region9: #{tpu_custom_call.1} parent=1 // pred_fallthru
      _
    // Predicated region
    $region10: #{tpu_custom_call.1} parent=1 // pred_check
      _
    $region11: #{tpu_custom_call.1} parent=1 // pred_check_branch
      %42 = sbr.rel (0) target = $region13
    $region12: #{tpu_custom_call.1} parent=1 // pred_region
      %s44 = ssub.s32 1024, 1024
      %45 = vsyncadd [#allocation6], %s44
      %s46 = sshll.u32 [#allocation7], 4
      %s47 = int_to_ptr.vmem [resolvable:$true] %s46
      %52 = dma.hbm_to_vmem [thread:$0]  %s2, 1024, %s47, [#allocation6], 256, 256, 16
    $region13: #{tpu_custom_call.1} parent=1 // pred_fallthru
      _
    // Predicated region
    $region14: #{tpu_custom_call.1} parent=1 // pred_check
      _
    $region15: #{tpu_custom_call.1} parent=1 // pred_check_branch
      %54 = sbr.rel (0) target = $region17
    $region16: #{tpu_custom_call.1} parent=1 // pred_region
      _
    $region17: #{tpu_custom_call.1} parent=1 // pred_fallthru
      _
    // Predicated region
    $region18: #{tpu_custom_call.1} parent=1 // pred_check
      _
    $region19: #{tpu_custom_call.1} parent=1 // pred_check_branch
      %56 = sbr.rel (0) target = $region21
    $region20: #{tpu_custom_call.1} parent=1 // pred_region
      %s58 = ssub.s32 768, 768
      %59 = vsyncadd [#allocation9], %s58
      %s60 = sshll.u32 [#allocation8], 4
      %s61 = int_to_ptr.vmem [resolvable:$true] %s60
      %66 = dma.hbm_to_vmem [thread:$0]  %s4, 768, %s61, [#allocation9], 128, 128, 8
    $region21: #{tpu_custom_call.1} parent=1 // pred_fallthru
      _
    // Predicated region
    $region22: #{tpu_custom_call.1} parent=1 // pred_check
      _
    $region23: #{tpu_custom_call.1} parent=1 // pred_check_branch
      %68 = sbr.rel (0) target = $region25
    $region24: #{tpu_custom_call.1} parent=1 // pred_region
      %69 = dma.done [#allocation3], 256
    $region25: #{tpu_custom_call.1} parent=1 // pred_fallthru
      _
    // Predicated region
    $region26: #{tpu_custom_call.1} parent=1 // pred_check
      _
    $region27: #{tpu_custom_call.1} parent=1 // pred_check_branch
      %71 = sbr.rel (0) target = $region29
    $region28: #{tpu_custom_call.1} parent=1 // pred_region
      %72 = dma.done [#allocation6], 512
    $region29: #{tpu_custom_call.1} parent=1 // pred_fallthru
      _
    // Predicated region
    $region30: #{tpu_custom_call.1} parent=1 // pred_check
      _
    $region31: #{tpu_custom_call.1} parent=1 // pred_check_branch
      %74 = sbr.rel (0) target = $region33
    $region32: #{tpu_custom_call.1} parent=1 // pred_region
      %75 = dma.done [#allocation6], 1024
    $region33: #{tpu_custom_call.1} parent=1 // pred_fallthru
      _
    // Predicated region
    $region34: #{tpu_custom_call.1} parent=1 // pred_check
      _
    $region35: #{tpu_custom_call.1} parent=1 // pred_check_branch
      %77 = sbr.rel (0) target = $region37
    $region36: #{tpu_custom_call.1} parent=1 // pred_region
      %78 = dma.done [#allocation9], 768
    $region37: #{tpu_custom_call.1} parent=1 // pred_fallthru
      _
    %v79 = vld [vmem:[#allocation2] sm:$0xff]
    %v80 = vld [vmem:[#allocation2 + $0x8] sm:$0xff]
    %v81 = vld [vmem:[#allocation5] sm:$0xff]
    %v82 = vld [vmem:[#allocation5 + $0x8] sm:$0xff]
    %v83 = vld [vmem:[#allocation5 + $0x10] sm:$0xff]
    %v84 = vld [vmem:[#allocation5 + $0x18] sm:$0xff]
    %v85 = vld [vmem:[#allocation7] sm:$0xff]
    %v86 = vld [vmem:[#allocation7 + $0x8] sm:$0xff]
    %v87 = vld [vmem:[#allocation7 + $0x10] sm:$0xff]
    %v88 = vld [vmem:[#allocation7 + $0x18] sm:$0xff]
    %v89 = vld [vmem:[#allocation7 + $0x20] sm:$0xff]
    %v90 = vld [vmem:[#allocation7 + $0x28] sm:$0xff]
    %v91 = vld [vmem:[#allocation7 + $0x30] sm:$0xff]
    %v92 = vld [vmem:[#allocation7 + $0x38] sm:$0xff]
    %v93 = vld [vmem:[%s3] sm:$0x3]
    %v95 = vlaneseq
    %v96 = vshrl.u32 %v95, 7
    %v97 = vsub.s32 0, %v96
    %v98 = vrot.slane %v93, %v97
    %v99 = vlaneseq
    %v100 = vshrl.u32 %v99, 7
    %v101 = vsub.s32 1, %v100
    %v102 = vrot.slane %v93, %v101
    %vm105 = vcmask 261120
    %v107 = vsel %vm105, %v79, 0
    %v110 = vsel %vm105, %v80, 0
    %112 = vmatprep.subr.mxu0 %v86
    %113 = vmatpush1.msra.mxu0 %v85
    %114 = vmatprep.subr.mxu0 %v88
    %115 = vmatpush1.msra.mxu0 %v87
    %116 = vmatprep.subr.mxu0 %v90
    %117 = vmatpush1.msra.mxu0 %v89
    %118 = vmatprep.subr.mxu0 %v92
    %119 = vmatpush1.msra.mxu0 %v91
    %120 = vmatprep.subr.mxu0 0.0
    %121 = vmatpush1.msra.mxu0 0.0
    %122 = vmatprep.subr.mxu0 0.0
    %123 = vmatpush1.msra.mxu0 0.0
    %124 = vmatprep.subr.mxu0 0.0
    %125 = vmatpush1.msra.mxu0 0.0
    %126 = vmatprep.subr.mxu0 0.0
    %127 = vmatpush1.msra.mxu0 0.0
    %128 = vmatprep.subr.mxu0 0.0
    %129 = vmatpush1.msra.mxu0 0.0
    %130 = vmatprep.subr.mxu0 0.0
    %131 = vmatpush1.msra.mxu0 0.0
    %132 = vmatprep.subr.mxu0 0.0
    %133 = vmatpush1.msra.mxu0 0.0
    %134 = vmatprep.subr.mxu0 0.0
    %135 = vmatpush1.msra.mxu0 0.0
    %136 = vmatprep.subr.mxu0 0.0
    %137 = vmatpush1.msra.mxu0 0.0
    %138 = vmatprep.subr.mxu0 0.0
    %139 = vmatpush1.msra.mxu0 0.0
    %140 = vmatprep.subr.mxu0 0.0
    %141 = vmatpush1.msra.mxu0 0.0
    %142 = vmatprep.subr.mxu0 0.0
    %143 = vmatpush1.msra.mxu0 0.0
    %144 = vmatprep.subr.mxu0 0.0
    %145 = vmatpush1.msra.mxu0 0.0
    %146 = vmatprep.subr.mxu0 0.0
    %147 = vmatpush1.msra.mxu0 0.0
    %148 = vmatprep.subr.mxu0 0.0
    %149 = vmatpush1.msra.mxu0 0.0
    %150 = vmatprep.subr.mxu0 0.0
    %151 = vmatpush1.msra.mxu0 0.0
    %152 = vmatprep.subr.mxu0 0.0
    %153 = vmatpush1.msra.mxu0 0.0
    %154 = vmatprep.subr.mxu0 0.0
    %155 = vmatpush1.msra.mxu0 0.0
    %156 = vmatprep.subr.mxu0 0.0
    %157 = vmatpush1.msra.mxu0 0.0
    %158 = vmatprep.subr.mxu0 0.0
    %159 = vmatpush1.msra.mxu0 0.0
    %160 = vmatprep.subr.mxu0 0.0
    %161 = vmatpush1.msra.mxu0 0.0
    %162 = vmatprep.subr.mxu0 0.0
    %163 = vmatpush1.msra.mxu0 0.0
    %164 = vmatprep.subr.mxu0 0.0
    %165 = vmatpush1.msra.mxu0 0.0
    %166 = vmatprep.subr.mxu0 0.0
    %167 = vmatpush1.msra.mxu0 0.0
    %168 = vmatprep.subr.mxu0 0.0
    %169 = vmatpush1.msra.mxu0 0.0
    %170 = vmatprep.subr.mxu0 0.0
    %171 = vmatpush1.msra.mxu0 0.0
    %172 = vmatprep.subr.mxu0 0.0
    %173 = vmatpush1.msra.mxu0 0.0
    %174 = vmatprep.subr.mxu0 0.0
    %175 = vmatpush1.msra.mxu0 0.0
    %176 = vmatprep.mubr.f32.mxu0 0.0
    %177 = vmatmul.mubr.f32.gmra.mrb[0].mxu0 %v107
    %v178 = vpop.f32.mrb[0].mxu0
    %v179 = vadd.f32 %v98, %v178
    %v180 = vpop.f32.mrb[0].mxu0
    %v181 = vadd.f32 %v102, %v180
    %182 = vmatprep.mubr.f32.mxu0 0.0
    %183 = vmatmul.mubr.f32.gmra.mrb[0].mxu0 %v110
    %v184 = vpop.f32.mrb[0].mxu0
    %v185 = vadd.f32 %v98, %v184
    %v186 = vpop.f32.mrb[0].mxu0
    %v187 = vadd.f32 %v102, %v186
    %188 = vdwg.mxu0
    %vm189 = vcmask 392192
    %v191 = vsel %vm189, %v179, 0
    %v194 = vsel %vm189, %v81, 0
    %v197 = vsel %vm189, %v82, 0
    %199 = vmatprep.subr.mxu0 0.0
    %200 = vmatpush1.xpose.msra.mxu0 %v194
    %201 = vmatprep.subr.mxu0 0.0
    %202 = vmatpush1.xpose.msra.mxu0 %v197
    %203 = vmatprep.subr.mxu0 0.0
    %204 = vmatpush1.xpose.msra.mxu0 0.0
    %205 = vmatprep.subr.mxu0 0.0
    %206 = vmatpush1.xpose.msra.mxu0 0.0
    %207 = vmatprep.subr.mxu0 0.0
    %208 = vmatpush1.xpose.msra.mxu0 0.0
    %209 = vmatprep.subr.mxu0 0.0
    %210 = vmatpush1.xpose.msra.mxu0 0.0
    %211 = vmatprep.subr.mxu0 0.0
    %212 = vmatpush1.xpose.msra.mxu0 0.0
    %213 = vmatprep.subr.mxu0 0.0
    %214 = vmatpush1.xpose.msra.mxu0 0.0
    %215 = vmatprep.subr.mxu0 0.0
    %216 = vmatpush1.xpose.msra.mxu0 0.0
    %217 = vmatprep.subr.mxu0 0.0
    %218 = vmatpush1.xpose.msra.mxu0 0.0
    %219 = vmatprep.subr.mxu0 0.0
    %220 = vmatpush1.xpose.msra.mxu0 0.0
    %221 = vmatprep.subr.mxu0 0.0
    %222 = vmatpush1.xpose.msra.mxu0 0.0
    %223 = vmatprep.subr.mxu0 0.0
    %224 = vmatpush1.xpose.msra.mxu0 0.0
    %225 = vmatprep.subr.mxu0 0.0
    %226 = vmatpush1.xpose.msra.mxu0 0.0
    %227 = vmatprep.subr.mxu0 0.0
    %228 = vmatpush1.xpose.msra.mxu0 0.0
    %229 = vmatprep.subr.mxu0 0.0
    %230 = vmatpush1.xpose.msra.mxu0 0.0
    %231 = vmatprep.subr.mxu0 0.0
    %232 = vmatpush1.xpose.msra.mxu0 0.0
    %233 = vmatprep.subr.mxu0 0.0
    %234 = vmatpush1.xpose.msra.mxu0 0.0
    %235 = vmatprep.subr.mxu0 0.0
    %236 = vmatpush1.xpose.msra.mxu0 0.0
    %237 = vmatprep.subr.mxu0 0.0
    %238 = vmatpush1.xpose.msra.mxu0 0.0
    %239 = vmatprep.subr.mxu0 0.0
    %240 = vmatpush1.xpose.msra.mxu0 0.0
    %241 = vmatprep.subr.mxu0 0.0
    %242 = vmatpush1.xpose.msra.mxu0 0.0
    %243 = vmatprep.subr.mxu0 0.0
    %244 = vmatpush1.xpose.msra.mxu0 0.0
    %245 = vmatprep.subr.mxu0 0.0
    %246 = vmatpush1.xpose.msra.mxu0 0.0
    %247 = vmatprep.subr.mxu0 0.0
    %248 = vmatpush1.xpose.msra.mxu0 0.0
    %249 = vmatprep.subr.mxu0 0.0
    %250 = vmatpush1.xpose.msra.mxu0 0.0
    %251 = vmatprep.subr.mxu0 0.0
    %252 = vmatpush1.xpose.msra.mxu0 0.0
    %253 = vmatprep.subr.mxu0 0.0
    %254 = vmatpush1.xpose.msra.mxu0 0.0
    %255 = vmatprep.subr.mxu0 0.0
    %256 = vmatpush1.xpose.msra.mxu0 0.0
    %257 = vmatprep.subr.mxu0 0.0
    %258 = vmatpush1.xpose.msra.mxu0 0.0
    %259 = vmatprep.subr.mxu0 0.0
    %260 = vmatpush1.xpose.msra.mxu0 0.0
    %261 = vmatprep.subr.mxu0 0.0
    %262 = vmatpush1.xpose.msra.mxu0 0.0
    %263 = vmatprep.mubr.f32.mxu0 0.0
    %264 = vmatmul.mubr.f32.gmra.mrb[0].mxu0 %v191
    %v265 = vpop.f32.mrb[0].mxu0
    %v266 = vadd.f32 0.0, %v265
    %v267 = vpop.f32.mrb[0].mxu0
    %268 = vdwg.mxu0
    %v270 = vsel %vm189, %v185, 0
    %v273 = vsel %vm189, %v83, 0
    %v276 = vsel %vm189, %v84, 0
    %278 = vmatprep.subr.mxu0 0.0
    %279 = vmatpush1.xpose.msra.mxu0 %v273
    %280 = vmatprep.subr.mxu0 0.0
    %281 = vmatpush1.xpose.msra.mxu0 %v276
    %282 = vmatprep.subr.mxu0 0.0
    %283 = vmatpush1.xpose.msra.mxu0 0.0
    %284 = vmatprep.subr.mxu0 0.0
    %285 = vmatpush1.xpose.msra.mxu0 0.0
    %286 = vmatprep.subr.mxu0 0.0
    %287 = vmatpush1.xpose.msra.mxu0 0.0
    %288 = vmatprep.subr.mxu0 0.0
    %289 = vmatpush1.xpose.msra.mxu0 0.0
    %290 = vmatprep.subr.mxu0 0.0
    %291 = vmatpush1.xpose.msra.mxu0 0.0
    %292 = vmatprep.subr.mxu0 0.0
    %293 = vmatpush1.xpose.msra.mxu0 0.0
    %294 = vmatprep.subr.mxu0 0.0
    %295 = vmatpush1.xpose.msra.mxu0 0.0
    %296 = vmatprep.subr.mxu0 0.0
    %297 = vmatpush1.xpose.msra.mxu0 0.0
    %298 = vmatprep.subr.mxu0 0.0
    %299 = vmatpush1.xpose.msra.mxu0 0.0
    %300 = vmatprep.subr.mxu0 0.0
    %301 = vmatpush1.xpose.msra.mxu0 0.0
    %302 = vmatprep.subr.mxu0 0.0
    %303 = vmatpush1.xpose.msra.mxu0 0.0
    %304 = vmatprep.subr.mxu0 0.0
    %305 = vmatpush1.xpose.msra.mxu0 0.0
    %306 = vmatprep.subr.mxu0 0.0
    %307 = vmatpush1.xpose.msra.mxu0 0.0
    %308 = vmatprep.subr.mxu0 0.0
    %309 = vmatpush1.xpose.msra.mxu0 0.0
    %310 = vmatprep.subr.mxu0 0.0
    %311 = vmatpush1.xpose.msra.mxu0 0.0
    %312 = vmatprep.subr.mxu0 0.0
    %313 = vmatpush1.xpose.msra.mxu0 0.0
    %314 = vmatprep.subr.mxu0 0.0
    %315 = vmatpush1.xpose.msra.mxu0 0.0
    %316 = vmatprep.subr.mxu0 0.0
    %317 = vmatpush1.xpose.msra.mxu0 0.0
    %318 = vmatprep.subr.mxu0 0.0
    %319 = vmatpush1.xpose.msra.mxu0 0.0
    %320 = vmatprep.subr.mxu0 0.0
    %321 = vmatpush1.xpose.msra.mxu0 0.0
    %322 = vmatprep.subr.mxu0 0.0
    %323 = vmatpush1.xpose.msra.mxu0 0.0
    %324 = vmatprep.subr.mxu0 0.0
    %325 = vmatpush1.xpose.msra.mxu0 0.0
    %326 = vmatprep.subr.mxu0 0.0
    %327 = vmatpush1.xpose.msra.mxu0 0.0
    %328 = vmatprep.subr.mxu0 0.0
    %329 = vmatpush1.xpose.msra.mxu0 0.0
    %330 = vmatprep.subr.mxu0 0.0
    %331 = vmatpush1.xpose.msra.mxu0 0.0
    %332 = vmatprep.subr.mxu0 0.0
    %333 = vmatpush1.xpose.msra.mxu0 0.0
    %334 = vmatprep.subr.mxu0 0.0
    %335 = vmatpush1.xpose.msra.mxu0 0.0
    %336 = vmatprep.subr.mxu0 0.0
    %337 = vmatpush1.xpose.msra.mxu0 0.0
    %338 = vmatprep.subr.mxu0 0.0
    %339 = vmatpush1.xpose.msra.mxu0 0.0
    %340 = vmatprep.subr.mxu0 0.0
    %341 = vmatpush1.xpose.msra.mxu0 0.0
    %342 = vmatprep.mubr.f32.mxu0 0.0
    %343 = vmatmul.mubr.f32.gmra.mrb[0].mxu0 %v270
    %v344 = vpop.f32.mrb[0].mxu0
    %v345 = vadd.f32 0.0, %v344
    %v346 = vpop.f32.mrb[0].mxu0
    %347 = vdwg.mxu0
    %vm348 = vcmask 130048
    %v349 = vsel %vm348, %v266, -inf
    %350 = vmax.xlane.f32.xlu0 %v349
    %v351 = vpop.xlane.xlu0 %350
    %v352 = vsel %vm348, %v345, -inf
    %353 = vmax.xlane.f32.xlu0 %v352
    %v354 = vpop.xlane.xlu0 %353
    %v355 = vsub.f32 %v266, %v351
    %v356 = vsub.f32 %v345, %v354
    %v357 = vmul.f32 %v355, 1.442695
    %v358 = vpow.pop %v357
    %v359 = vmul.f32 %v356, 1.442695
    %v360 = vpow.pop %v359
    %v361 = vsel %vm348, %v358, 0.0
    %362 = vadd.xlane.f32.xlu0 %v361
    %v363 = vpop.xlane.xlu0 %362
    %v364 = vsel %vm348, %v360, 0.0
    %365 = vadd.xlane.f32.xlu0 %v364
    %v366 = vpop.xlane.xlu0 %365
    %v367 = vrcp.pop %v363
    %v368 = vrcp.pop %v366
    %v369 = vmul.f32 %v358, %v367
    %v370 = vmul.f32 %v360, %v368
    %371 = vst.msk [vmem:[#allocation11] sm:$0xff] %vm348, %v369
    %372 = vst.msk [vmem:[#allocation11 + $0x8] sm:$0xff] %vm348, %v370
    %v374 = vsel %vm348, %v369, 0
    %376 = vmatprep.subr.mxu0 0.0
    %377 = vmatpush1.msra.mxu0 %v81
    %378 = vmatprep.subr.mxu0 0.0
    %379 = vmatpush1.msra.mxu0 %v82
    %380 = vmatprep.subr.mxu0 0.0
    %381 = vmatpush1.msra.mxu0 0.0
    %382 = vmatprep.subr.mxu0 0.0
    %383 = vmatpush1.msra.mxu0 0.0
    %384 = vmatprep.subr.mxu0 0.0
    %385 = vmatpush1.msra.mxu0 0.0
    %386 = vmatprep.subr.mxu0 0.0
    %387 = vmatpush1.msra.mxu0 0.0
    %388 = vmatprep.subr.mxu0 0.0
    %389 = vmatpush1.msra.mxu0 0.0
    %390 = vmatprep.subr.mxu0 0.0
    %391 = vmatpush1.msra.mxu0 0.0
    %392 = vmatprep.subr.mxu0 0.0
    %393 = vmatpush1.msra.mxu0 0.0
    %394 = vmatprep.subr.mxu0 0.0
    %395 = vmatpush1.msra.mxu0 0.0
    %396 = vmatprep.subr.mxu0 0.0
    %397 = vmatpush1.msra.mxu0 0.0
    %398 = vmatprep.subr.mxu0 0.0
    %399 = vmatpush1.msra.mxu0 0.0
    %400 = vmatprep.subr.mxu0 0.0
    %401 = vmatpush1.msra.mxu0 0.0
    %402 = vmatprep.subr.mxu0 0.0
    %403 = vmatpush1.msra.mxu0 0.0
    %404 = vmatprep.subr.mxu0 0.0
    %405 = vmatpush1.msra.mxu0 0.0
    %406 = vmatprep.subr.mxu0 0.0
    %407 = vmatpush1.msra.mxu0 0.0
    %408 = vmatprep.subr.mxu0 0.0
    %409 = vmatpush1.msra.mxu0 0.0
    %410 = vmatprep.subr.mxu0 0.0
    %411 = vmatpush1.msra.mxu0 0.0
    %412 = vmatprep.subr.mxu0 0.0
    %413 = vmatpush1.msra.mxu0 0.0
    %414 = vmatprep.subr.mxu0 0.0
    %415 = vmatpush1.msra.mxu0 0.0
    %416 = vmatprep.subr.mxu0 0.0
    %417 = vmatpush1.msra.mxu0 0.0
    %418 = vmatprep.subr.mxu0 0.0
    %419 = vmatpush1.msra.mxu0 0.0
    %420 = vmatprep.subr.mxu0 0.0
    %421 = vmatpush1.msra.mxu0 0.0
    %422 = vmatprep.subr.mxu0 0.0
    %423 = vmatpush1.msra.mxu0 0.0
    %424 = vmatprep.subr.mxu0 0.0
    %425 = vmatpush1.msra.mxu0 0.0
    %426 = vmatprep.subr.mxu0 0.0
    %427 = vmatpush1.msra.mxu0 0.0
    %428 = vmatprep.subr.mxu0 0.0
    %429 = vmatpush1.msra.mxu0 0.0
    %430 = vmatprep.subr.mxu0 0.0
    %431 = vmatpush1.msra.mxu0 0.0
    %432 = vmatprep.subr.mxu0 0.0
    %433 = vmatpush1.msra.mxu0 0.0
    %434 = vmatprep.subr.mxu0 0.0
    %435 = vmatpush1.msra.mxu0 0.0
    %436 = vmatprep.subr.mxu0 0.0
    %437 = vmatpush1.msra.mxu0 0.0
    %438 = vmatprep.subr.mxu0 0.0
    %439 = vmatpush1.msra.mxu0 0.0
    %440 = vmatprep.mubr.f32.mxu0 0.0
    %441 = vmatmul.mubr.f32.gmra.mrb[0].mxu0 %v374
    %v442 = vpop.f32.mrb[0].mxu0
    %v443 = vadd.f32 0.0, %v442
    %v444 = vpop.f32.mrb[0].mxu0
    %445 = vdwg.mxu0
    %v447 = vsel %vm348, %v370, 0
    %449 = vmatprep.subr.mxu0 0.0
    %450 = vmatpush1.msra.mxu0 %v83
    %451 = vmatprep.subr.mxu0 0.0
    %452 = vmatpush1.msra.mxu0 %v84
    %453 = vmatprep.subr.mxu0 0.0
    %454 = vmatpush1.msra.mxu0 0.0
    %455 = vmatprep.subr.mxu0 0.0
    %456 = vmatpush1.msra.mxu0 0.0
    %457 = vmatprep.subr.mxu0 0.0
    %458 = vmatpush1.msra.mxu0 0.0
    %459 = vmatprep.subr.mxu0 0.0
    %460 = vmatpush1.msra.mxu0 0.0
    %461 = vmatprep.subr.mxu0 0.0
    %462 = vmatpush1.msra.mxu0 0.0
    %463 = vmatprep.subr.mxu0 0.0
    %464 = vmatpush1.msra.mxu0 0.0
    %465 = vmatprep.subr.mxu0 0.0
    %466 = vmatpush1.msra.mxu0 0.0
    %467 = vmatprep.subr.mxu0 0.0
    %468 = vmatpush1.msra.mxu0 0.0
    %469 = vmatprep.subr.mxu0 0.0
    %470 = vmatpush1.msra.mxu0 0.0
    %471 = vmatprep.subr.mxu0 0.0
    %472 = vmatpush1.msra.mxu0 0.0
    %473 = vmatprep.subr.mxu0 0.0
    %474 = vmatpush1.msra.mxu0 0.0
    %475 = vmatprep.subr.mxu0 0.0
    %476 = vmatpush1.msra.mxu0 0.0
    %477 = vmatprep.subr.mxu0 0.0
    %478 = vmatpush1.msra.mxu0 0.0
    %479 = vmatprep.subr.mxu0 0.0
    %480 = vmatpush1.msra.mxu0 0.0
    %481 = vmatprep.subr.mxu0 0.0
    %482 = vmatpush1.msra.mxu0 0.0
    %483 = vmatprep.subr.mxu0 0.0
    %484 = vmatpush1.msra.mxu0 0.0
    %485 = vmatprep.subr.mxu0 0.0
    %486 = vmatpush1.msra.mxu0 0.0
    %487 = vmatprep.subr.mxu0 0.0
    %488 = vmatpush1.msra.mxu0 0.0
    %489 = vmatprep.subr.mxu0 0.0
    %490 = vmatpush1.msra.mxu0 0.0
    %491 = vmatprep.subr.mxu0 0.0
    %492 = vmatpush1.msra.mxu0 0.0
    %493 = vmatprep.subr.mxu0 0.0
    %494 = vmatpush1.msra.mxu0 0.0
    %495 = vmatprep.subr.mxu0 0.0
    %496 = vmatpush1.msra.mxu0 0.0
    %497 = vmatprep.subr.mxu0 0.0
    %498 = vmatpush1.msra.mxu0 0.0
    %499 = vmatprep.subr.mxu0 0.0
    %500 = vmatpush1.msra.mxu0 0.0
    %501 = vmatprep.subr.mxu0 0.0
    %502 = vmatpush1.msra.mxu0 0.0
    %503 = vmatprep.subr.mxu0 0.0
    %504 = vmatpush1.msra.mxu0 0.0
    %505 = vmatprep.subr.mxu0 0.0
    %506 = vmatpush1.msra.mxu0 0.0
    %507 = vmatprep.subr.mxu0 0.0
    %508 = vmatpush1.msra.mxu0 0.0
    %509 = vmatprep.subr.mxu0 0.0
    %510 = vmatpush1.msra.mxu0 0.0
    %511 = vmatprep.subr.mxu0 0.0
    %512 = vmatpush1.msra.mxu0 0.0
    %513 = vmatprep.mubr.f32.mxu0 0.0
    %514 = vmatmul.mubr.f32.gmra.mrb[0].mxu0 %v447
    %v515 = vpop.f32.mrb[0].mxu0
    %v516 = vadd.f32 0.0, %v515
    %v517 = vpop.f32.mrb[0].mxu0
    %518 = vdwg.mxu0
    %v519 = vld [vmem:[#allocation8] sm:$0xff]
    %v520 = vld [vmem:[#allocation8 + $0x8] sm:$0xff]
    %v521 = vld [vmem:[#allocation8 + $0x10] sm:$0xff]
    %v522 = vld [vmem:[#allocation8 + $0x18] sm:$0xff]
    %v523 = vld [vmem:[#allocation8 + $0x20] sm:$0xff]
    %v524 = vld [vmem:[#allocation8 + $0x28] sm:$0xff]
    %v526 = vsel %vm189, %v443, 0
    %v529 = vsel %vm189, %v516, 0
    %531 = vmatprep.subr.mxu0 0.0
    %532 = vmatpush1.msra.mxu0 %v519
    %533 = vmatprep.subr.mxu0 0.0
    %534 = vmatpush1.msra.mxu0 %v520
    %535 = vmatprep.subr.mxu0 0.0
    %536 = vmatpush1.msra.mxu0 %v521
    %537 = vmatprep.subr.mxu0 0.0
    %538 = vmatpush1.msra.mxu0 %v522
    %539 = vmatprep.subr.mxu0 0.0
    %540 = vmatpush1.msra.mxu0 %v523
    %541 = vmatprep.subr.mxu0 0.0
    %542 = vmatpush1.msra.mxu0 %v524
    %543 = vmatprep.subr.mxu0 0.0
    %544 = vmatpush1.msra.mxu0 0.0
    %545 = vmatprep.subr.mxu0 0.0
    %546 = vmatpush1.msra.mxu0 0.0
    %547 = vmatprep.subr.mxu0 0.0
    %548 = vmatpush1.msra.mxu0 0.0
    %549 = vmatprep.subr.mxu0 0.0
    %550 = vmatpush1.msra.mxu0 0.0
    %551 = vmatprep.subr.mxu0 0.0
    %552 = vmatpush1.msra.mxu0 0.0
    %553 = vmatprep.subr.mxu0 0.0
    %554 = vmatpush1.msra.mxu0 0.0
    %555 = vmatprep.subr.mxu0 0.0
    %556 = vmatpush1.msra.mxu0 0.0
    %557 = vmatprep.subr.mxu0 0.0
    %558 = vmatpush1.msra.mxu0 0.0
    %559 = vmatprep.subr.mxu0 0.0
    %560 = vmatpush1.msra.mxu0 0.0
    %561 = vmatprep.subr.mxu0 0.0
    %562 = vmatpush1.msra.mxu0 0.0
    %563 = vmatprep.subr.mxu0 0.0
    %564 = vmatpush1.msra.mxu0 0.0
    %565 = vmatprep.subr.mxu0 0.0
    %566 = vmatpush1.msra.mxu0 0.0
    %567 = vmatprep.subr.mxu0 0.0
    %568 = vmatpush1.msra.mxu0 0.0
    %569 = vmatprep.subr.mxu0 0.0
    %570 = vmatpush1.msra.mxu0 0.0
    %571 = vmatprep.subr.mxu0 0.0
    %572 = vmatpush1.msra.mxu0 0.0
    %573 = vmatprep.subr.mxu0 0.0
    %574 = vmatpush1.msra.mxu0 0.0
    %575 = vmatprep.subr.mxu0 0.0
    %576 = vmatpush1.msra.mxu0 0.0
    %577 = vmatprep.subr.mxu0 0.0
    %578 = vmatpush1.msra.mxu0 0.0
    %579 = vmatprep.subr.mxu0 0.0
    %580 = vmatpush1.msra.mxu0 0.0
    %581 = vmatprep.subr.mxu0 0.0
    %582 = vmatpush1.msra.mxu0 0.0
    %583 = vmatprep.subr.mxu0 0.0
    %584 = vmatpush1.msra.mxu0 0.0
    %585 = vmatprep.subr.mxu0 0.0
    %586 = vmatpush1.msra.mxu0 0.0
    %587 = vmatprep.subr.mxu0 0.0
    %588 = vmatpush1.msra.mxu0 0.0
    %589 = vmatprep.subr.mxu0 0.0
    %590 = vmatpush1.msra.mxu0 0.0
    %591 = vmatprep.subr.mxu0 0.0
    %592 = vmatpush1.msra.mxu0 0.0
    %593 = vmatprep.subr.mxu0 0.0
    %594 = vmatpush1.msra.mxu0 0.0
    %595 = vmatprep.mubr.f32.mxu0 0.0
    %596 = vmatmul.mubr.f32.gmra.mrb[0].mxu0 %v526
    %v597 = vpop.f32.mrb[0].mxu0
    %v598 = vadd.f32 %v181, %v597
    %v599 = vpop.f32.mrb[0].mxu0
    %600 = vmatprep.mubr.f32.mxu0 0.0
    %601 = vmatmul.mubr.f32.gmra.mrb[0].mxu0 %v529
    %v602 = vpop.f32.mrb[0].mxu0
    %v603 = vadd.f32 %v187, %v602
    %v604 = vpop.f32.mrb[0].mxu0
    %605 = vdwg.mxu0
    %v606 = vtanh.pop %v598
    %v607 = vtanh.pop %v603
    %608 = vst [vmem:[#allocation10] sm:$0xff] %v606
    %609 = vst [vmem:[#allocation10 + $0x8] sm:$0xff] %v607
    // Predicated region
    $region38: #{tpu_custom_call.1} parent=1 // pred_check
      _
    $region39: #{tpu_custom_call.1} parent=1 // pred_check_branch
      %611 = sbr.rel (0) target = $region41
    $region40: #{tpu_custom_call.1} parent=1 // pred_region
      %s613 = ssub.s32 256, 256
      %614 = vsyncadd [#allocation4], %s613
      %s615 = sshll.u32 [#allocation10], 4
      %s616 = int_to_ptr.vmem [resolvable:$true] %s615
      %621 = dma.vmem_to_hbm [thread:$0]  %s616, 256, %s5, [#allocation4], 128, 128, 8
    $region41: #{tpu_custom_call.1} parent=1 // pred_fallthru
      _
    // Predicated region
    $region42: #{tpu_custom_call.1} parent=1 // pred_check
      _
    $region43: #{tpu_custom_call.1} parent=1 // pred_check_branch
      %623 = sbr.rel (0) target = $region45
    $region44: #{tpu_custom_call.1} parent=1 // pred_region
      %s625 = ssub.s32 256, 256
      %626 = vsyncadd [#allocation12], %s625
      %s627 = sshll.u32 [#allocation11], 4
      %s628 = int_to_ptr.vmem [resolvable:$true] %s627
      %633 = dma.vmem_to_hbm [thread:$0]  %s628, 256, %s6, [#allocation12], 128, 128, 8
    $region45: #{tpu_custom_call.1} parent=1 // pred_fallthru
      _
    // Predicated region
    $region46: #{tpu_custom_call.1} parent=1 // pred_check
      _
    $region47: #{tpu_custom_call.1} parent=1 // pred_check_branch
      %635 = sbr.rel (0) target = $region49
    $region48: #{tpu_custom_call.1} parent=1 // pred_region
      %636 = dma.done [#allocation4], 256
    $region49: #{tpu_custom_call.1} parent=1 // pred_fallthru
      _
    // Predicated region
    $region50: #{tpu_custom_call.1} parent=1 // pred_check
      _
    $region51: #{tpu_custom_call.1} parent=1 // pred_check_branch
      %638 = sbr.rel (0) target = $region53
    $region52: #{tpu_custom_call.1} parent=1 // pred_region
      %639 = dma.done [#allocation12], 256
    $region53: #{tpu_custom_call.1} parent=1 // pred_fallthru
      _
    %640 = vsyncpa [#allocation3], 1
    %641 = vsyncpa [#allocation6], 1
    %642 = vsyncpa [#allocation9], 1
    %643 = vsyncpa [#allocation4], 1
    %644 = vsyncpa [#allocation12], 1

</llo_original>
